<compile_context>
chip_gen: v5e
topology: v5e:2x2
jax: 0.10.0
libtpu: 0.0.40
codegen_flags: <defaults>
</compile_context>

<pallas_src>
import math

import jax
import jax.numpy as jnp
import numpy as np
from jax.experimental import pallas as pl
from jax.experimental.pallas import tpu as pltpu


# ----------------------------------------------------------------------------
# Parameter construction (deterministic, mirrors the PyTorch __init__)
# ----------------------------------------------------------------------------
def cal_freq_list(frequency_num, max_radius, min_radius):
    # 'geometric' branch of _cal_freq_list
    log_timescale_increment = math.log(float(max_radius) / float(min_radius)) / (
        frequency_num * 1.0 - 1
    )
    timescales = min_radius * np.exp(
        np.arange(frequency_num).astype(float) * log_timescale_increment
    )
    return 1.0 / timescales  # (F,)


def _unit_vecs(uv_theta):
    if uv_theta == 0:
        return np.asarray(
            [
                [1.0, 0.0],
                [-1.0 / 2.0, math.sqrt(3) / 2.0],
                [-1.0 / 2.0, -math.sqrt(3) / 2.0],
            ]
        )
    elif uv_theta == 30:
        return np.asarray(
            [
                [math.sqrt(3) / 2.0, 1.0 / 2.0],
                [-math.sqrt(3) / 2.0, 1.0 / 2.0],
                [0.0, -1.0],
            ]
        )
    elif uv_theta == 60:
        return np.asarray(
            [
                [1.0 / 2.0, math.sqrt(3) / 2.0],
                [-1.0, 0.0],
                [1.0 / 2.0, -math.sqrt(3) / 2.0],
            ]
        )
    raise ValueError("uv_theta accepts 0, 30, or 60")


def build_projection_and_bias(frequency_num, max_radius, min_radius, uv_theta=0):
    """Returns (W, bias):
       W    : (2, 6F) float32, W[:, f*6+2k] = W[:, f*6+2k+1] = unit_vec_k * freq[f]
       bias : (1, 6F) float32, 0 on even columns (sin), pi/2 on odd columns (cos)
    """
    freq_list = cal_freq_list(frequency_num, max_radius, min_radius)  # (F,)
    unit_vecs = _unit_vecs(uv_theta)                                   # (3, 2)

    F = frequency_num
    W = np.zeros((2, 6 * F), dtype=np.float64)
    for f in range(F):
        for k in range(3):
            W[:, f * 6 + 2 * k] = unit_vecs[k] * freq_list[f]
            W[:, f * 6 + 2 * k + 1] = unit_vecs[k] * freq_list[f]

    cols = np.arange(6 * F)
    bias = np.where((cols % 2) == 1, np.pi / 2.0, 0.0).reshape(1, 6 * F)

    return jnp.asarray(W, dtype=jnp.float32), jnp.asarray(bias, dtype=jnp.float32)


# ----------------------------------------------------------------------------
# Pallas kernel
# ----------------------------------------------------------------------------
def _grid_cell_kernel(coords_ref, w_ref, bias_ref, out_ref):
    # coords_ref: (TM, 2)   w_ref: (2, 6F)   bias_ref: (1, 6F)   out_ref: (TM, 6F)
    cx = coords_ref[:, 0:1]          # (TM, 1)
    cy = coords_ref[:, 1:2]          # (TM, 1)
    wx = w_ref[0:1, :]               # (1, 6F)
    wy = w_ref[1:2, :]               # (1, 6F)
    # K=2 "matmul" done on the VPU as broadcast mul + add (MXU would be ~1% used).
    phase = cx * wx + cy * wy        # (TM, 6F) f32
    # Single transcendental pass: even cols bias=0 -> sin, odd cols bias=pi/2 -> cos.
    out_ref[...] = jnp.sin(phase + bias_ref[...])


def theory_grid_cell_encode(
    coords,
    frequency_num=16,
    max_radius=360,
    min_radius=0.0001,
    uv_theta=0,
    tile_m=512,
):
    """coords: (B, N, 2) array -> (B, N, 6*frequency_num) float32."""
    B, N, coord_dim = coords.shape
    assert coord_dim == 2
    D_out = 6 * frequency_num

    W, bias = build_projection_and_bias(frequency_num, max_radius, min_radius, uv_theta)

    M = B * N
    coords_flat = jnp.reshape(coords.astype(jnp.float32), (M, 2))

    # --- Tile-size selection -------------------------------------------------
    # Cap tile_m so double-buffered output (2 * tile_m * D_out * 4B) stays well
    # under the scoped VMEM limit (safe for v5e 16 MiB / v6e 32 MiB / v7x 32 MiB
    # scoped, 64 MiB physical).
    vmem_budget_bytes = 12 << 20
    cap = max(8, (vmem_budget_bytes // (2 * D_out * 4)) // 8 * 8)
    tile_m = max(8, min(tile_m, cap))

    # Shrink tile to the (8-rounded) input size when M is small, so tiny inputs
    # don't get padded up to a huge tile and common sizes need no padding at all.
    M8 = ((M + 7) // 8) * 8
    tile_m = min(tile_m, M8)

    M_pad = ((M + tile_m - 1) // tile_m) * tile_m
    if M_pad != M:
        coords_flat = jnp.pad(coords_flat, ((0, M_pad - M), (0, 0)))

    grid = (M_pad // tile_m,)

    out_flat = pl.pallas_call(
        _grid_cell_kernel,
        out_shape=jax.ShapeDtypeStruct((M_pad, D_out), jnp.float32),
        grid_spec=pltpu.PrefetchScalarGridSpec(
            num_scalar_prefetch=0,
            grid=grid,
            in_specs=[
                pl.BlockSpec((tile_m, 2), lambda i: (i, 0)),
                pl.BlockSpec((2, D_out), lambda i: (0, 0)),
                pl.BlockSpec((1, D_out), lambda i: (0, 0)),
            ],
            out_specs=pl.BlockSpec((tile_m, D_out), lambda i: (i, 0)),
        ),
        compiler_params=pltpu.CompilerParams(
            dimension_semantics=("parallel",),
        ),
    )(coords_flat, W, bias)

    if M_pad != M:
        # Only happens when M is not a multiple of tile_m (rare with adaptive tile).
        out_flat = out_flat[:M]
    return jnp.reshape(out_flat, (B, N, D_out))


# ----------------------------------------------------------------------------
# Pure-JAX reference (same math as the PyTorch module) for a sanity check
# ----------------------------------------------------------------------------
def reference_encode(coords, frequency_num=16, max_radius=360, min_radius=0.0001,
                     uv_theta=0):
    B, N, _ = coords.shape
    W, _ = build_projection_and_bias(frequency_num, max_radius, min_radius, uv_theta)
    c = jnp.reshape(coords.astype(jnp.float32), (B * N, 2))
    phase = jnp.dot(c, W, preferred_element_type=jnp.float32)
    col = jnp.arange(6 * frequency_num)
    out = jnp.where((col % 2) == 0, jnp.sin(phase), jnp.cos(phase))
    return jnp.reshape(out, (B, N, 6 * frequency_num))


if __name__ == "__main__":
    B, N = 2, 8                 # batch_size, num_context_pt
    frequency_num = 16          # -> output dim 6 * 16 = 96
    key = jax.random.PRNGKey(0)
    coords = jax.random.uniform(
        key, (B, N, 2), dtype=jnp.float32, minval=-1.0, maxval=1.0
    )

    out = theory_grid_cell_encode(coords, frequency_num=frequency_num)
    out = jax.block_until_ready(out)

    assert out.shape == (B, N, 6 * frequency_num), out.shape
    assert out.dtype == jnp.float32

    ref = jax.block_until_ready(reference_encode(coords, frequency_num=frequency_num))
    # cos(x) is computed as sin(x + pi/2); with phases up to ~1e4 the extra f32
    # rounding of the argument stays well inside this tolerance.
    np.testing.assert_allclose(np.asarray(out), np.asarray(ref), atol=2e-2, rtol=0)

    print("KERNEL_OK")
</pallas_src>

<mosaic_0001>
module attributes {stable_mosaic.version = 11 : i64} {
  func.func @_grid_cell_kernel(%arg0: i32, %arg1: memref<16x2xf32, #tpu.memory_space<vmem>>, %arg2: memref<2x96xf32, #tpu.memory_space<vmem>>, %arg3: memref<1x96xf32, #tpu.memory_space<vmem>>, %arg4: memref<16x96xf32, #tpu.memory_space<vmem>>) attributes {dimension_semantics = [#tpu.dimension_semantics<parallel>], iteration_bounds = array<i64: 1>, scalar_prefetch = 0 : i64, scratch_operands = 0 : i64, tpu.core_type = #tpu.core_type<tc>, window_params = [{transform_indices = @transform_0, window_bounds = array<i64: 16, 2>}, {pipeline_mode = #tpu.pipeline_mode<synchronous>, transform_indices = @transform_1, window_bounds = array<i64: 2, 96>}, {pipeline_mode = #tpu.pipeline_mode<synchronous>, transform_indices = @transform_2, window_bounds = array<i64: 1, 96>}, {transform_indices = @transform_3, window_bounds = array<i64: 16, 96>}]} {
    %c0 = arith.constant 0 : index
    %c0_0 = arith.constant 0 : index
    %0 = vector.load %arg1[%c0, %c0_0] : memref<16x2xf32, #tpu.memory_space<vmem>>, vector<16x1xf32>
    %c0_1 = arith.constant 0 : index
    %c1 = arith.constant 1 : index
    %1 = vector.load %arg1[%c0_1, %c1] : memref<16x2xf32, #tpu.memory_space<vmem>>, vector<16x1xf32>
    %c0_2 = arith.constant 0 : index
    %c0_3 = arith.constant 0 : index
    %2 = vector.load %arg2[%c0_2, %c0_3] : memref<2x96xf32, #tpu.memory_space<vmem>>, vector<1x96xf32>
    %c1_4 = arith.constant 1 : index
    %c0_5 = arith.constant 0 : index
    %3 = vector.load %arg2[%c1_4, %c0_5] : memref<2x96xf32, #tpu.memory_space<vmem>>, vector<1x96xf32>
    %4 = vector.broadcast %0 : vector<16x1xf32> to vector<16x96xf32>
    %5 = vector.broadcast %2 : vector<1x96xf32> to vector<16x96xf32>
    %6 = arith.mulf %4, %5 : vector<16x96xf32>
    %7 = vector.broadcast %1 : vector<16x1xf32> to vector<16x96xf32>
    %8 = vector.broadcast %3 : vector<1x96xf32> to vector<16x96xf32>
    %9 = arith.mulf %7, %8 : vector<16x96xf32>
    %10 = arith.addf %6, %9 : vector<16x96xf32>
    %c0_6 = arith.constant 0 : index
    %c0_7 = arith.constant 0 : index
    %11 = vector.load %arg3[%c0_6, %c0_7] : memref<1x96xf32, #tpu.memory_space<vmem>>, vector<1x96xf32>
    %12 = vector.broadcast %11 : vector<1x96xf32> to vector<16x96xf32>
    %13 = arith.addf %10, %12 : vector<16x96xf32>
    %14 = math.sin %13 : vector<16x96xf32>
    %c0_8 = arith.constant 0 : index
    %c0_9 = arith.constant 0 : index
    %15 = vector.load %arg4[%c0_8, %c0_9] : memref<16x96xf32, #tpu.memory_space<vmem>>, vector<16x96xf32>
    tpu.vector_store %arg4[%c0_8, %c0_9], %14 {strides = array<i32>} : memref<16x96xf32, #tpu.memory_space<vmem>>, vector<16x96xf32>,
    return
  }
  func.func @transform_0(%arg0: i32) -> (i32, i32) {
    %c0_i32 = arith.constant 0 : i32
    %c0_i32_0 = arith.constant 0 : i32
    return %arg0, %c0_i32 : i32, i32
  }
  func.func @transform_1(%arg0: i32) -> (i32, i32) {
    %c0_i32 = arith.constant 0 : i32
    %c0_i32_0 = arith.constant 0 : i32
    %c0_i32_1 = arith.constant 0 : i32
    return %c0_i32, %c0_i32_0 : i32, i32
  }
  func.func @transform_2(%arg0: i32) -> (i32, i32) {
    %c0_i32 = arith.constant 0 : i32
    %c0_i32_0 = arith.constant 0 : i32
    %c0_i32_1 = arith.constant 0 : i32
    return %c0_i32, %c0_i32_0 : i32, i32
  }
  func.func @transform_3(%arg0: i32) -> (i32, i32) {
    %c0_i32 = arith.constant 0 : i32
    %c0_i32_0 = arith.constant 0 : i32
    return %arg0, %c0_i32 : i32, i32
  }
}

</mosaic_0001>

<llo_original>
// kernel: tpu_custom_call.1
$region0: #{tpu_custom_call.1}
  #allocation0 [shape = 'u32[]', space=smem, size = 0x4, offset = 0x4, fixed_abs, tag = 'smem constant byte address 0x4 - core index']
  #allocation1 [shape = 'u32[72,128]{1,0:T(1,128)}', space=vmem, size = 0x9000, scoped, tag = 'internal scratch']
  %s0 = inlined_call_operand.vmem [shape: f32[16,2], index: 0, kind: input, shape index: {}]
  %s1 = inlined_call_operand.vmem [shape: f32[2,96], index: 1, kind: input, shape index: {}]
  %s2 = inlined_call_operand.vmem [shape: f32[1,96], index: 2, kind: input, shape index: {}]
  %s3 = inlined_call_operand.hbm [shape: f32[16,96], index: 3, kind: output, shape index: {}]
  %s4 = sld [smem:[#allocation0]]
  $region22: #{tpu_custom_call.1} parent=0
    _
  %s6 = ssub.s32 1, %s4
  %s7 = scalar_select 0, %s6, %s4
  $region1: #{tpu_custom_call.1} parent=0
    #allocation2 [shape = 'u8[8192]{0}', space=vmem, size = 0x2000, scoped, tag = 'output window, operand 0, single buffered']
    #allocation3 [shape = 's32[1]{0}', space=sflag, size = 0x4, scoped, tag = 'scoped memory for tpu_custom_call.1']
    %8 = vsyncpa [#allocation3], 0
    // Predicated region
    $region2: #{tpu_custom_call.1} parent=1 // pred_check
      _
    $region3: #{tpu_custom_call.1} parent=1 // pred_check_branch
      %10 = sbr.rel (0) target = $region5
    $region4: #{tpu_custom_call.1} parent=1 // pred_region
      _
    $region5: #{tpu_custom_call.1} parent=1 // pred_fallthru
      _
    // Predicated region
    $region6: #{tpu_custom_call.1} parent=1 // pred_check
      _
    $region7: #{tpu_custom_call.1} parent=1 // pred_check_branch
      %12 = sbr.rel (0) target = $region9
    $region8: #{tpu_custom_call.1} parent=1 // pred_region
      _
    $region9: #{tpu_custom_call.1} parent=1 // pred_fallthru
      _
    // Predicated region
    $region10: #{tpu_custom_call.1} parent=1 // pred_check
      _
    $region11: #{tpu_custom_call.1} parent=1 // pred_check_branch
      %14 = sbr.rel (0) target = $region13
    $region12: #{tpu_custom_call.1} parent=1 // pred_region
      _
    $region13: #{tpu_custom_call.1} parent=1 // pred_fallthru
      _
    %v15 = vld [vmem:[%s0] sm:$0xff]
    %v16 = vld [vmem:[%s0 + $0x8] sm:$0xff]
    %v17 = vld [vmem:[%s1] sm:$0x1]
    %v18 = vld [vmem:[%s1 + $0x1] sm:$0x1]
    %20 = vset.pattern.permute.xlu0 0
    %21 = vperm.xlu0 %20, %v15
    %v22 = vpop.permute.xlu0 %21
    %25 = vset.pattern.permute.xlu0 0
    %26 = vperm.xlu0 %25, %v16
    %v27 = vpop.permute.xlu0 %26
    %v29 = vperm.slane %v17, 0
    %v30 = vmul.f32 %v22, %v29
    %v31 = vmul.f32 %v27, %v29
    %32 = vset.pattern.permute.xlu0 1
    %33 = vperm.xlu0 %32, %v15
    %v34 = vpop.permute.xlu0 %33
    %36 = vset.pattern.permute.xlu0 1
    %37 = vperm.xlu0 %36, %v16
    %v38 = vpop.permute.xlu0 %37
    %v40 = vperm.slane %v18, 0
    %v41 = vmul.f32 %v34, %v40
    %v42 = vmul.f32 %v38, %v40
    %v43 = vadd.f32 %v30, %v41
    %v44 = vadd.f32 %v31, %v42
    %v45 = vld [vmem:[%s2] sm:$0x1]
    %v47 = vperm.slane %v45, 0
    %v49 = vadd.f32 %v43, %v47
    %v50 = vadd.f32 %v44, %v47
    %v51 = vand.u32 2147483647, %v49
    %vm52 = vcmp.le.f32.partialorder %v51, 0.7853982
    %vm53 = vcmp.lt.s32.totalorder %v49, 0
    %v54 = vand.u32 %v49, 2139095040
    %v55 = vshrl.u32 %v54, 23
    %v56 = vsub.s32 %v55, 127
    %v57 = vand.u32 2147483647, %v49
    %v58 = vand.u32 %v57, 8388607
    %v59 = vor.u32 %v58, 8388608
    %v60 = vsub.s32 0, %v59
    %v61 = vadd.s32 %v56, 1
    %vm62 = vcmp.gt.s32.totalorder %v61, 0
    %v63 = vsel %vm62, %v61, 0
    %v64 = vshrl.u32 %v63, 5
    %v65 = vand.u32 %v63, 31
    %v66 = vsub.s32 32, %v65
    %v67 = vshrl.u32 683565275, %v66
    %v68 = vshll.u32 683565275, %v65
    %v69 = vshrl.u32 2475754826, %v66
    %v70 = vor.u32 %v68, %v69
    %v71 = vshll.u32 2475754826, %v65
    %v72 = vshrl.u32 2131351028, %v66
    %v73 = vor.u32 %v71, %v72
    %v74 = vshll.u32 2131351028, %v65
    %v75 = vshrl.u32 2102212464, %v66
    %v76 = vor.u32 %v74, %v75
    %v77 = vshll.u32 2102212464, %v65
    %v78 = vshrl.u32 920167782, %v66
    %v79 = vor.u32 %v77, %v78
    %v80 = vshll.u32 920167782, %v65
    %v81 = vshrl.u32 1326507024, %v66
    %v82 = vor.u32 %v80, %v81
    %vm83 = vcmp.lt.s32.totalorder %v64, 1
    %vm84 = vcmp.lt.s32.totalorder %v64, 2
    %vm85 = vcmp.lt.s32.totalorder %v64, 3
    %vm86 = vcmp.lt.s32.totalorder %v64, 4
    %v87 = vsel %vm83, %v67, %v70
    %v88 = vsel %vm86, %v76, 2102212464
    %v89 = vsel %vm85, %v73, %v88
    %v90 = vsel %vm84, %v87, %v89
    %v91 = vsel %vm83, %v70, %v73
    %v92 = vsel %vm86, %v79, 920167782
    %v93 = vsel %vm85, %v76, %v92
    %v94 = vsel %vm84, %v91, %v93
    %v95 = vsel %vm83, %v73, %v76
    %v96 = vsel %vm86, %v82, 1326507024
    %v97 = vsel %vm85, %v79, %v96
    %v98 = vsel %vm84, %v95, %v97
    %v99 = vshll.u32 %v59, 8
    %v100 = vand.u32 %v99, 65535
    %v101 = vshrl.u32 %v99, 16
    %v102 = vand.u32 %v98, 65535
    %v103 = vshrl.u32 %v98, 16
    %v104 = vmul.u32 %v100, %v102
    %v105 = vmul.u32 %v100, %v103
    %v106 = vmul.u32 %v101, %v102
    %v107 = vmul.u32 %v101, %v103
    %v108 = vshll.u32 %v105, 16
    %v109 = vshrl.u32 %v105, 16
    %v110 = vshll.u32 %v106, 16
    %v111 = vshrl.u32 %v106, 16
    %vm112 = vc.u32 %v104, %v108
    %v113 = vsel %vm112, 1, 0
    %v114 = vadd.s32 %v104, %v108
    %v115 = vadd.s32 %v107, %v113
    %vm116 = vc.u32 %v114, %v110
    %v117 = vsel %vm116, 1, 0
    %v118 = vadd.s32 %v114, %v110
    %v119 = vadd.s32 %v115, %v117
    %v120 = vadd.s32 %v119, %v109
    %v121 = vadd.s32 %v120, %v111
    %v122 = vand.u32 %v99, 65535
    %v123 = vshrl.u32 %v99, 16
    %v124 = vand.u32 %v94, 65535
    %v125 = vshrl.u32 %v94, 16
    %v126 = vmul.u32 %v122, %v124
    %v127 = vmul.u32 %v122, %v125
    %v128 = vmul.u32 %v123, %v124
    %v129 = vmul.u32 %v123, %v125
    %v130 = vshll.u32 %v127, 16
    %v131 = vshrl.u32 %v127, 16
    %v132 = vshll.u32 %v128, 16
    %v133 = vshrl.u32 %v128, 16
    %vm134 = vc.u32 %v126, %v130
    %v135 = vsel %vm134, 1, 0
    %v136 = vadd.s32 %v126, %v130
    %v137 = vadd.s32 %v129, %v135
    %vm138 = vc.u32 %v136, %v132
    %v139 = vsel %vm138, 1, 0
    %v140 = vadd.s32 %v136, %v132
    %v141 = vadd.s32 %v137, %v139
    %v142 = vadd.s32 %v141, %v131
    %v143 = vadd.s32 %v142, %v133
    %v144 = vmul.u32 %v99, %v90
    %v145 = vadd.s32 %v121, %v140
    %vm146 = vc.u32 %v121, %v140
    %v147 = vadd.s32 %v143, 1
    %v148 = vsel %vm146, %v147, %v143
    %v149 = vadd.s32 %v144, %v148
    %v150 = vadd.s32 %v149, 536870912
    %v151 = vshrl.u32 %v150, 30
    %v152 = vshll.u32 %v151, 30
    %v153 = vsub.s32 %v149, %v152
    %vm154 = vcmp.lt.s32.totalorder %v153, 0
    %v155 = vsub.s32 0, %v153
    %v156 = vsel %vm154, %v155, %v153
    %v157 = vclz %v156
    %v158 = vsub.s32 %v157, 2
    %vm159 = vcmp.gt.s32.totalorder 0, %v158
    %v160 = vsel %vm159, 0, %v158
    %v161 = vsub.s32 32, %v160
    %v162 = vshll.u32 %v153, %v160
    %v163 = vshrl.u32 %v145, %v161
    %v164 = vor.u32 %v162, %v163
    %v165 = vsub.s32 4294967266, %v160
    %v166 = vadd.s32 %v165, 127
    %v167 = vshll.u32 %v166, 23
    %v168 = vor.u32 4788187, %v167
    %v169 = vand.u32 2147483647, %v168
    %v171 = vcvt.s32.f32 %v164
    %v172 = vmul.f32 %v171, %v169
    %v173 = vxor.u32 %v172, 2147483648
    %v174 = vsel %vm53, %v173, %v172
    %v175 = vsub.s32 4, %v151
    %v176 = vsel %vm53, %v175, %v151
    %v177 = vsel %vm52, %v49, %v174
    %v178 = vsel %vm52, 0, %v176
    %v179 = vmul.f32 %v177, %v177
    %v180 = vmul.f32 %v179, -0.001358992
    %v181 = vadd.f32 %v180, 0.041655596
    %v182 = vmul.f32 %v179, %v181
    %v183 = vadd.f32 %v182, -0.4999988
    %v184 = vmul.f32 %v179, %v183
    %v185 = vadd.f32 1.0, %v184
    %v186 = vmul.f32 %v177, %v177
    %v187 = vmul.f32 %v186, -0.00019511016
    %v188 = vadd.f32 %v187, 0.008332121
    %v189 = vmul.f32 %v186, %v188
    %v190 = vadd.f32 %v189, -0.16666654
    %v191 = vmul.f32 %v186, %v190
    %v192 = vadd.f32 %v191, 1.0
    %v193 = vmul.f32 %v192, %v177
    %vm194 = vweird.f32 %v49
    %v195 = vadd.s32 %v178, 3
    %v196 = vand.u32 %v195, 3
    %vm197 = vcmp.lt.s32.totalorder %v196, 2
    %vm198 = vcmp.eq.s32.totalorder %v196, 0
    %v199 = vxor.u32 %v193, 2147483648
    %v200 = vsel %vm198, %v185, %v199
    %vm201 = vcmp.eq.s32.totalorder %v196, 2
    %v202 = vxor.u32 %v185, 2147483648
    %v203 = vsel %vm201, %v202, %v193
    %v204 = vsel %vm197, %v200, %v203
    %v205 = vsel %vm194, nan, %v204
    %v206 = vand.u32 2147483647, %v50
    %vm207 = vcmp.le.f32.partialorder %v206, 0.7853982
    %vm208 = vcmp.lt.s32.totalorder %v50, 0
    %v209 = vand.u32 %v50, 2139095040
    %v210 = vshrl.u32 %v209, 23
    %v211 = vsub.s32 %v210, 127
    %v212 = vand.u32 2147483647, %v50
    %v213 = vand.u32 %v212, 8388607
    %v214 = vor.u32 %v213, 8388608
    %v215 = vsub.s32 0, %v214
    %v216 = vadd.s32 %v211, 1
    %vm217 = vcmp.gt.s32.totalorder %v216, 0
    %v218 = vsel %vm217, %v216, 0
    %v219 = vshrl.u32 %v218, 5
    %v220 = vand.u32 %v218, 31
    %v221 = vsub.s32 32, %v220
    %v222 = vshrl.u32 683565275, %v221
    %v223 = vshll.u32 683565275, %v220
    %v224 = vshrl.u32 2475754826, %v221
    %v225 = vor.u32 %v223, %v224
    %v226 = vshll.u32 2475754826, %v220
    %v227 = vshrl.u32 2131351028, %v221
    %v228 = vor.u32 %v226, %v227
    %v229 = vshll.u32 2131351028, %v220
    %v230 = vshrl.u32 2102212464, %v221
    %v231 = vor.u32 %v229, %v230
    %v232 = vshll.u32 2102212464, %v220
    %v233 = vshrl.u32 920167782, %v221
    %v234 = vor.u32 %v232, %v233
    %v235 = vshll.u32 920167782, %v220
    %v236 = vshrl.u32 1326507024, %v221
    %v237 = vor.u32 %v235, %v236
    %vm238 = vcmp.lt.s32.totalorder %v219, 1
    %vm239 = vcmp.lt.s32.totalorder %v219, 2
    %vm240 = vcmp.lt.s32.totalorder %v219, 3
    %vm241 = vcmp.lt.s32.totalorder %v219, 4
    %v242 = vsel %vm238, %v222, %v225
    %v243 = vsel %vm241, %v231, 2102212464
    %v244 = vsel %vm240, %v228, %v243
    %v245 = vsel %vm239, %v242, %v244
    %v246 = vsel %vm238, %v225, %v228
    %v247 = vsel %vm241, %v234, 920167782
    %v248 = vsel %vm240, %v231, %v247
    %v249 = vsel %vm239, %v246, %v248
    %v250 = vsel %vm238, %v228, %v231
    %v251 = vsel %vm241, %v237, 1326507024
    %v252 = vsel %vm240, %v234, %v251
    %v253 = vsel %vm239, %v250, %v252
    %v254 = vshll.u32 %v214, 8
    %v255 = vand.u32 %v254, 65535
    %v256 = vshrl.u32 %v254, 16
    %v257 = vand.u32 %v253, 65535
    %v258 = vshrl.u32 %v253, 16
    %v259 = vmul.u32 %v255, %v257
    %v260 = vmul.u32 %v255, %v258
    %v261 = vmul.u32 %v256, %v257
    %v262 = vmul.u32 %v256, %v258
    %v263 = vshll.u32 %v260, 16
    %v264 = vshrl.u32 %v260, 16
    %v265 = vshll.u32 %v261, 16
    %v266 = vshrl.u32 %v261, 16
    %vm267 = vc.u32 %v259, %v263
    %v268 = vsel %vm267, 1, 0
    %v269 = vadd.s32 %v259, %v263
    %v270 = vadd.s32 %v262, %v268
    %vm271 = vc.u32 %v269, %v265
    %v272 = vsel %vm271, 1, 0
    %v273 = vadd.s32 %v269, %v265
    %v274 = vadd.s32 %v270, %v272
    %v275 = vadd.s32 %v274, %v264
    %v276 = vadd.s32 %v275, %v266
    %v277 = vand.u32 %v254, 65535
    %v278 = vshrl.u32 %v254, 16
    %v279 = vand.u32 %v249, 65535
    %v280 = vshrl.u32 %v249, 16
    %v281 = vmul.u32 %v277, %v279
    %v282 = vmul.u32 %v277, %v280
    %v283 = vmul.u32 %v278, %v279
    %v284 = vmul.u32 %v278, %v280
    %v285 = vshll.u32 %v282, 16
    %v286 = vshrl.u32 %v282, 16
    %v287 = vshll.u32 %v283, 16
    %v288 = vshrl.u32 %v283, 16
    %vm289 = vc.u32 %v281, %v285
    %v290 = vsel %vm289, 1, 0
    %v291 = vadd.s32 %v281, %v285
    %v292 = vadd.s32 %v284, %v290
    %vm293 = vc.u32 %v291, %v287
    %v294 = vsel %vm293, 1, 0
    %v295 = vadd.s32 %v291, %v287
    %v296 = vadd.s32 %v292, %v294
    %v297 = vadd.s32 %v296, %v286
    %v298 = vadd.s32 %v297, %v288
    %v299 = vmul.u32 %v254, %v245
    %v300 = vadd.s32 %v276, %v295
    %vm301 = vc.u32 %v276, %v295
    %v302 = vadd.s32 %v298, 1
    %v303 = vsel %vm301, %v302, %v298
    %v304 = vadd.s32 %v299, %v303
    %v305 = vadd.s32 %v304, 536870912
    %v306 = vshrl.u32 %v305, 30
    %v307 = vshll.u32 %v306, 30
    %v308 = vsub.s32 %v304, %v307
    %vm309 = vcmp.lt.s32.totalorder %v308, 0
    %v310 = vsub.s32 0, %v308
    %v311 = vsel %vm309, %v310, %v308
    %v312 = vclz %v311
    %v313 = vsub.s32 %v312, 2
    %vm314 = vcmp.gt.s32.totalorder 0, %v313
    %v315 = vsel %vm314, 0, %v313
    %v316 = vsub.s32 32, %v315
    %v317 = vshll.u32 %v308, %v315
    %v318 = vshrl.u32 %v300, %v316
    %v319 = vor.u32 %v317, %v318
    %v320 = vsub.s32 4294967266, %v315
    %v321 = vadd.s32 %v320, 127
    %v322 = vshll.u32 %v321, 23
    %v323 = vor.u32 4788187, %v322
    %v324 = vand.u32 2147483647, %v323
    %v326 = vcvt.s32.f32 %v319
    %v327 = vmul.f32 %v326, %v324
    %v328 = vxor.u32 %v327, 2147483648
    %v329 = vsel %vm208, %v328, %v327
    %v330 = vsub.s32 4, %v306
    %v331 = vsel %vm208, %v330, %v306
    %v332 = vsel %vm207, %v50, %v329
    %v333 = vsel %vm207, 0, %v331
    %v334 = vmul.f32 %v332, %v332
    %v335 = vmul.f32 %v334, -0.001358992
    %v336 = vadd.f32 %v335, 0.041655596
    %v337 = vmul.f32 %v334, %v336
    %v338 = vadd.f32 %v337, -0.4999988
    %v339 = vmul.f32 %v334, %v338
    %v340 = vadd.f32 1.0, %v339
    %v341 = vmul.f32 %v332, %v332
    %v342 = vmul.f32 %v341, -0.00019511016
    %v343 = vadd.f32 %v342, 0.008332121
    %v344 = vmul.f32 %v341, %v343
    %v345 = vadd.f32 %v344, -0.16666654
    %v346 = vmul.f32 %v341, %v345
    %v347 = vadd.f32 %v346, 1.0
    %v348 = vmul.f32 %v347, %v332
    %vm349 = vweird.f32 %v50
    %v350 = vadd.s32 %v333, 3
    %v351 = vand.u32 %v350, 3
    %vm352 = vcmp.lt.s32.totalorder %v351, 2
    %vm353 = vcmp.eq.s32.totalorder %v351, 0
    %v354 = vxor.u32 %v348, 2147483648
    %v355 = vsel %vm353, %v340, %v354
    %vm356 = vcmp.eq.s32.totalorder %v351, 2
    %v357 = vxor.u32 %v340, 2147483648
    %v358 = vsel %vm356, %v357, %v348
    %v359 = vsel %vm352, %v355, %v358
    %v360 = vsel %vm349, nan, %v359
    %vm361 = vcmask 785408
    %362 = vst.msk [vmem:[#allocation2] sm:$0xff] %vm361, %v205
    %363 = vst.msk [vmem:[#allocation2 + $0x8] sm:$0xff] %vm361, %v360
    // Predicated region
    $region14: #{tpu_custom_call.1} parent=1 // pred_check
      _
    $region15: #{tpu_custom_call.1} parent=1 // pred_check_branch
      %365 = sbr.rel (0) target = $region17
    $region16: #{tpu_custom_call.1} parent=1 // pred_region
      %367 = vsyncadd [#allocation3], 0
      %s368 = sshll.u32 [#allocation2], 4
      %s369 = int_to_ptr.vmem [resolvable:$true] %s368
      %s370 = sshll.u32 %s3, 4
      %s371 = int_to_ptr.hbm [resolvable:$true] %s370
      %376 = dma.vmem_to_hbm [thread:$0]  %s369, 256, %s371, [#allocation3], 128, 128, 8
    $region17: #{tpu_custom_call.1} parent=1 // pred_fallthru
      _
    // Predicated region
    $region18: #{tpu_custom_call.1} parent=1 // pred_check
      _
    $region19: #{tpu_custom_call.1} parent=1 // pred_check_branch
      %378 = sbr.rel (0) target = $region21
    $region20: #{tpu_custom_call.1} parent=1 // pred_region
      %380 = dma.done [#allocation3], 256
    $region21: #{tpu_custom_call.1} parent=1 // pred_fallthru
      _
    %381 = vsyncpa [#allocation3], 1

</llo_original>
